<compile_context>
chip_gen: v7x
topology: tpu7x:2x2x1
jax: 0.10.0
libtpu: 0.0.40
codegen_flags: <defaults>
</compile_context>

<pallas_src>
import jax
import jax.numpy as jnp
from jax.experimental import pallas as pl
from jax.experimental.pallas import tpu as pltpu


def _row_sums_kernel(x_ref, t_ref, rs_ref):
    """One (TILE_R, C) tile: per-row sum of (normalized(neutralized(x)) * t)."""
    x = x_ref[...].astype(jnp.float32)
    t = t_ref[...].astype(jnp.float32)
    inv_c = jnp.float32(1.0 / x.shape[1])

    # Single fused reduction pass for the dot product:
    #   sum((x - mean)*t) = sum(x*t) - mean*sum(t)
    row_sum_x = jnp.sum(x, axis=1, keepdims=True)              # (TILE_R, 1)
    row_sum_t = jnp.sum(t, axis=1, keepdims=True)              # (TILE_R, 1)
    row_sum_xt = jnp.sum(x * t, axis=1, keepdims=True)         # (TILE_R, 1)
    row_mean = row_sum_x * inv_c
    row_dot = row_sum_xt - row_mean * row_sum_t

    # L1 of the neutralized row (the one remaining elementwise pass).
    row_l1 = jnp.sum(jnp.abs(x - row_mean), axis=1, keepdims=True)

    # Fused normalize: sum((neut/l1)*t) == sum(neut*t)/l1  (R divides, not R*C).
    rs_ref[...] = row_dot / row_l1


def _pick_tile_r(R, C, in_itemsize, *, vmem_budget_bytes=40 << 20, max_tile=4096):
    """Row-tile size with honest VMEM accounting and >=2 grid steps."""
    F32 = 4
    # Per row: 2 inputs x 2 pipeline buffers + ~3 f32-wide live intermediates
    # (f32 casts / x*t / |x - mean|) inside the kernel body.
    per_row = 2 * 2 * C * in_itemsize + 3 * C * F32
    tile = max(1, vmem_budget_bytes // per_row)
    # Sublane packing by dtype: f32 -> 8, bf16 -> 16, int8/fp8 -> 32.
    pack = max(8, 32 // max(in_itemsize, 1))
    # Always >= 2 grid steps (v7x has 2 TensorCores; pure overhead-free on 1-TC chips).
    tile = min(tile, max_tile, max(pl.cdiv(R, 2), 1))
    tile = (tile // pack) * pack
    if tile == 0:
        tile = min(pack, R)          # tiny R: one (possibly partial) block
    return min(tile, R)


def custom_loss2(x, t, *, tile_r=None):
    """CustomLoss2 forward.  Heavy (R, C) streaming runs in the Pallas kernel;
    the O(R) epilogue (sum, unbiased std, final divide) is plain JAX."""
    R, C = x.shape
    x_isize = jnp.dtype(x.dtype).itemsize
    t_isize = jnp.dtype(t.dtype).itemsize
    in_itemsize = max(x_isize, t_isize)
    if tile_r is None:
        tile_r = _pick_tile_r(R, C, in_itemsize)
    tile_r = min(int(tile_r), R)
    grid = (pl.cdiv(R, tile_r),)

    # Explicit VMEM limit matching the real per-step footprint (+ headroom),
    # capped so it stays under v7x's 64 MiB physical VMEM.
    per_row = 2 * 2 * C * in_itemsize + 3 * C * 4
    footprint = per_row * tile_r + 2 * tile_r * 4
    vmem_limit = int(min(max(footprint + (8 << 20), 16 << 20), 56 << 20))

    bytes_accessed = x.size * x_isize + t.size * t_isize + R * 4
    cost = pl.CostEstimate(flops=7 * R * C, transcendentals=0,
                           bytes_accessed=bytes_accessed)

    row_sums = pl.pallas_call(
        _row_sums_kernel,
        out_shape=jax.ShapeDtypeStruct((R, 1), jnp.float32),
        grid=grid,
        in_specs=[
            pl.BlockSpec((tile_r, C), lambda i: (i, 0)),
            pl.BlockSpec((tile_r, C), lambda i: (i, 0)),
        ],
        out_specs=pl.BlockSpec((tile_r, 1), lambda i: (i, 0)),
        compiler_params=pltpu.CompilerParams(
            dimension_semantics=("parallel",),   # no carried state -> megacore OK
            vmem_limit_bytes=vmem_limit),
        cost_estimate=cost,
    )(x, t)

    rs = row_sums[:, 0]                 # (R,) per-row sums of alpha*target
    total = jnp.sum(rs)
    std = jnp.std(rs, ddof=1)           # torch.std default: unbiased
    # NOTE: R == 1 (ddof divide-by-zero) and an all-constant row (row_l1 == 0)
    # produce inf/nan exactly like the PyTorch reference.
    return -total / std


def _reference_loss(x, t):
    # Pure-JAX reference mirroring the PyTorch module.
    x = x.astype(jnp.float32)
    t = t.astype(jnp.float32)
    neut = x - jnp.mean(x, axis=1, keepdims=True)
    alpha = neut / jnp.sum(jnp.abs(neut), axis=1, keepdims=True)
    prod = alpha * t
    row_sum = jnp.sum(prod, axis=1)
    std = jnp.std(row_sum, ddof=1)
    return -jnp.sum(prod) / std


if __name__ == "__main__":
    key = jax.random.PRNGKey(0)
    k1, k2, k3, k4, k5, k6 = jax.random.split(key, 6)

    # 1) Small canonical shape, auto tile (tile_r=128, grid=(2,)).
    R, C = 256, 256
    x = jax.random.normal(k1, (R, C), dtype=jnp.float32)
    t = jax.random.normal(k2, (R, C), dtype=jnp.float32)
    ref = _reference_loss(x, t)
    loss_auto = custom_loss2(x, t)
    jax.block_until_ready(loss_auto)
    assert jnp.allclose(loss_auto, ref, rtol=2e-5, atol=2e-5), (loss_auto, ref)

    # 2) Explicit small tile -> multi-step pipelined grid (grid=(4,)).
    loss_tiled = custom_loss2(x, t, tile_r=64)
    jax.block_until_ready(loss_tiled)
    assert jnp.allclose(loss_tiled, ref, rtol=2e-5, atol=2e-5), (loss_tiled, ref)

    # 3) Awkward R (not divisible by the auto tile) -> cdiv grid with a masked
    #    tail block (R=200, tile_r=96, grid=(3,)).
    R2, C2 = 200, 384
    x2 = jax.random.normal(k3, (R2, C2), dtype=jnp.float32)
    t2 = jax.random.normal(k4, (R2, C2), dtype=jnp.float32)
    ref2 = _reference_loss(x2, t2)
    loss2 = custom_loss2(x2, t2)
    jax.block_until_ready(loss2)
    assert jnp.allclose(loss2, ref2, rtol=2e-5, atol=2e-5), (loss2, ref2)

    # 4) bf16 inputs -> 16-row sublane packing path (kernel accumulates in f32).
    R3, C3 = 64, 256
    x3 = jax.random.normal(k5, (R3, C3), dtype=jnp.float32).astype(jnp.bfloat16)
    t3 = jax.random.normal(k6, (R3, C3), dtype=jnp.float32).astype(jnp.bfloat16)
    ref3 = _reference_loss(x3, t3)
    loss3 = custom_loss2(x3, t3)
    jax.block_until_ready(loss3)
    assert jnp.allclose(loss3, ref3, rtol=1e-4, atol=1e-4), (loss3, ref3)

    print("KERNEL_OK")
</pallas_src>

<mosaic_0001>
module attributes {stable_mosaic.version = 11 : i64} {
  func.func @_row_sums_kernel(%arg0: i32, %arg1: memref<128x256xf32, #tpu.memory_space<vmem>>, %arg2: memref<128x256xf32, #tpu.memory_space<vmem>>, %arg3: memref<128x1xf32, #tpu.memory_space<vmem>>) attributes {dimension_semantics = [#tpu.dimension_semantics<parallel>], iteration_bounds = array<i64: 2>, scalar_prefetch = 0 : i64, scratch_operands = 0 : i64, tpu.core_type = #tpu.core_type<tc>, window_params = [{transform_indices = @transform_0, window_bounds = array<i64: 128, 256>}, {transform_indices = @transform_1, window_bounds = array<i64: 128, 256>}, {transform_indices = @transform_2, window_bounds = array<i64: 128, 1>}]} {
    %c0 = arith.constant 0 : index
    %c0_0 = arith.constant 0 : index
    %0 = vector.load %arg1[%c0, %c0_0] : memref<128x256xf32, #tpu.memory_space<vmem>>, vector<128x256xf32>
    %c0_1 = arith.constant 0 : index
    %c0_2 = arith.constant 0 : index
    %1 = vector.load %arg2[%c0_1, %c0_2] : memref<128x256xf32, #tpu.memory_space<vmem>>, vector<128x256xf32>
    %cst = arith.constant dense<0.000000e+00> : vector<128xf32>
    %2 = vector.multi_reduction <add>, %0, %cst [1] : vector<128x256xf32> to vector<128xf32>
    %3 = vector.shape_cast %2 : vector<128xf32> to vector<128x1xf32>
    %cst_3 = arith.constant dense<0.000000e+00> : vector<128xf32>
    %4 = vector.multi_reduction <add>, %1, %cst_3 [1] : vector<128x256xf32> to vector<128xf32>
    %5 = vector.shape_cast %4 : vector<128xf32> to vector<128x1xf32>
    %6 = arith.mulf %0, %1 : vector<128x256xf32>
    %cst_4 = arith.constant dense<0.000000e+00> : vector<128xf32>
    %7 = vector.multi_reduction <add>, %6, %cst_4 [1] : vector<128x256xf32> to vector<128xf32>
    %8 = vector.shape_cast %7 : vector<128xf32> to vector<128x1xf32>
    %cst_5 = arith.constant 3.906250e-03 : f32
    %9 = vector.broadcast %cst_5 : f32 to vector<128x1xf32>
    %10 = arith.mulf %3, %9 : vector<128x1xf32>
    %11 = arith.mulf %10, %5 : vector<128x1xf32>
    %12 = arith.subf %8, %11 : vector<128x1xf32>
    %13 = vector.broadcast %10 : vector<128x1xf32> to vector<128x256xf32>
    %14 = arith.subf %0, %13 : vector<128x256xf32>
    %15 = math.absf %14 : vector<128x256xf32>
    %cst_6 = arith.constant dense<0.000000e+00> : vector<128xf32>
    %16 = vector.multi_reduction <add>, %15, %cst_6 [1] : vector<128x256xf32> to vector<128xf32>
    %17 = vector.shape_cast %16 : vector<128xf32> to vector<128x1xf32>
    %18 = arith.divf %12, %17 : vector<128x1xf32>
    %c0_7 = arith.constant 0 : index
    %c0_8 = arith.constant 0 : index
    %19 = vector.load %arg3[%c0_7, %c0_8] : memref<128x1xf32, #tpu.memory_space<vmem>>, vector<128x1xf32>
    tpu.vector_store %arg3[%c0_7, %c0_8], %18 {strides = array<i32>} : memref<128x1xf32, #tpu.memory_space<vmem>>, vector<128x1xf32>,
    return
  }
  func.func @transform_0(%arg0: i32) -> (i32, i32) {
    %c0_i32 = arith.constant 0 : i32
    %c0_i32_0 = arith.constant 0 : i32
    return %arg0, %c0_i32 : i32, i32
  }
  func.func @transform_1(%arg0: i32) -> (i32, i32) {
    %c0_i32 = arith.constant 0 : i32
    %c0_i32_0 = arith.constant 0 : i32
    return %arg0, %c0_i32 : i32, i32
  }
  func.func @transform_2(%arg0: i32) -> (i32, i32) {
    %c0_i32 = arith.constant 0 : i32
    %c0_i32_0 = arith.constant 0 : i32
    return %arg0, %c0_i32 : i32, i32
  }
}

</mosaic_0001>

<llo_original>
// kernel: tpu_custom_call.1
$region0: #{tpu_custom_call.1}
  #allocation0 [shape = 'u32[]', space=smem, size = 0x4, offset = 0x4, fixed_abs, tag = 'smem constant byte address 0x4 - core index']
  #allocation1 [shape = 'u32[144,128]{1,0:T(1,128)}', space=vmem, size = 0x12000, scoped, tag = 'internal scratch']
  %s0 = inlined_call_operand.hbm [shape: f32[256,256], index: 0, kind: input, shape index: {}]
  %s1 = inlined_call_operand.hbm [shape: f32[256,256], index: 1, kind: input, shape index: {}]
  %s2 = inlined_call_operand.vmem [shape: f32[256,1], index: 2, kind: output, shape index: {}]
  %s3 = sld [smem:[#allocation0]]
  $region49: #{tpu_custom_call.1} parent=0
    _
  %s5 = ssub.s32 1, %s3
  %s6 = scalar_select 0, %s5, %s3
  $region1: #{tpu_custom_call.1} parent=0
    #allocation2 [shape = 'u8[262144]{0}', space=vmem, size = 0x40000, scoped, tag = 'input window, operand 0']
    #allocation3 [shape = 's32[2]{0}', space=sflag, size = 0x8, scoped, tag = 'scoped memory for tpu_custom_call.1']
    #allocation4 [shape = 'u8[262144]{0}', space=vmem, size = 0x40000, scoped, tag = 'input window, operand 1']
    #allocation5 [shape = 's32[2]{0}', space=sflag, size = 0x8, scoped, tag = 'scoped memory for tpu_custom_call.1']
    %7 = vsyncpa [#allocation3], 0
    %s8 = scalar_lea.sflag [#allocation3], 1
    %9 = vsyncpa %s8, 0
    %10 = vsyncpa [#allocation5], 0
    %s11 = scalar_lea.sflag [#allocation5], 1
    %12 = vsyncpa %s11, 0
    loop: start=0, step=1, limit=4
    $region2: #{tpu_custom_call.1} parent=1 // loop_pre_header
      _
    $region3: #{tpu_custom_call.1} parent=1 // loop_header
      %s14 = sphi 0, %s18
      %p15 = scmp.ge.s32.totalorder %s14, 4
      %s24 = sphi 0, %s26
      %s27 = sphi 0, %s24
      %s28 = sphi 0, %s27
      %s44 = sphi 0, %s28
      %s50 = sphi 0, %s52
      %s53 = sphi 0, %s50
      %s54 = sphi 0, %s53
      %s70 = sphi 0, %s54
      %s76 = sphi 0, %s78
      %s79 = sphi 0, %s76
      %s80 = sphi 0, %s79
      %s96 = sphi 0, %s80
    $region4: #{tpu_custom_call.1} parent=1 // loop_header_branch
      %17 = sbr.rel (%p15) target = $region8
    $region5: #{tpu_custom_call.1} parent=1 // loop_body
      %s19 = ssub.s32 %s14, 1
      %s20 = ssub.s32 %s14, 2
      %s21 = sadd.s32 %s14, 1
      %s22 = ssub.s32 %s14, %s21
      %p23 = scmp.eq.s32.totalorder %s22, 0
      %s25 = sadd.s32 %s24, 1
      %s26 = scalar_select %p23, %s24, %s25
      %p29 = pneg %p23
      %p30 = scmp.eq.s32.totalorder %s14, 1
      %p31 = por %p29, %p30
      %p32 = scmp.ne.s32.totalorder %s24, %s27
      %p33 = scmp.eq.s32.totalorder %s14, 0
      %p34 = por %p32, %p33
      %p35 = scmp.ne.s32.totalorder %s24, %s27
      %p36 = scmp.eq.s32.totalorder %s19, 1
      %p37 = por %p35, %p36
      %p38 = scmp.ne.s32.totalorder %s27, %s28
      %p39 = scmp.eq.s32.totalorder %s19, 0
      %p40 = por %p38, %p39
      %p41 = scmp.ne.s32.totalorder %s27, %s28
      %p42 = scmp.eq.s32.totalorder %s20, 1
      %p43 = por %p41, %p42
      %p45 = scmp.ne.s32.totalorder %s28, %s44
      %p46 = scmp.eq.s32.totalorder %s20, 0
      %p47 = por %p45, %p46
      %s48 = ssub.s32 %s14, %s21
      %p49 = scmp.eq.s32.totalorder %s48, 0
      %s51 = sadd.s32 %s50, 1
      %s52 = scalar_select %p49, %s50, %s51
      %p55 = pneg %p49
      %p56 = scmp.eq.s32.totalorder %s14, 1
      %p57 = por %p55, %p56
      %p58 = scmp.ne.s32.totalorder %s50, %s53
      %p59 = scmp.eq.s32.totalorder %s14, 0
      %p60 = por %p58, %p59
      %p61 = scmp.ne.s32.totalorder %s50, %s53
      %p62 = scmp.eq.s32.totalorder %s19, 1
      %p63 = por %p61, %p62
      %p64 = scmp.ne.s32.totalorder %s53, %s54
      %p65 = scmp.eq.s32.totalorder %s19, 0
      %p66 = por %p64, %p65
      %p67 = scmp.ne.s32.totalorder %s53, %s54
      %p68 = scmp.eq.s32.totalorder %s20, 1
      %p69 = por %p67, %p68
      %p71 = scmp.ne.s32.totalorder %s54, %s70
      %p72 = scmp.eq.s32.totalorder %s20, 0
      %p73 = por %p71, %p72
      %s74 = ssub.s32 %s14, %s21
      %p75 = scmp.eq.s32.totalorder %s74, 0
      %s77 = sadd.s32 %s76, 1
      %s78 = scalar_select %p75, %s76, %s77
      %p81 = pneg %p75
      %p82 = scmp.eq.s32.totalorder %s14, 1
      %p83 = por %p81, %p82
      %p84 = scmp.ne.s32.totalorder %s76, %s79
      %p85 = scmp.eq.s32.totalorder %s14, 0
      %p86 = por %p84, %p85
      %p87 = scmp.ne.s32.totalorder %s76, %s79
      %p88 = scmp.eq.s32.totalorder %s19, 1
      %p89 = por %p87, %p88
      %p90 = scmp.ne.s32.totalorder %s79, %s80
      %p91 = scmp.eq.s32.totalorder %s19, 0
      %p92 = por %p90, %p91
      %p93 = scmp.ne.s32.totalorder %s79, %s80
      %p94 = scmp.eq.s32.totalorder %s20, 1
      %p95 = por %p93, %p94
      %p97 = scmp.ne.s32.totalorder %s80, %s96
      %p98 = scmp.eq.s32.totalorder %s20, 0
      %p99 = por %p97, %p98
      %p100 = scmp.le.s32.totalorder 1, %s14
      %p101 = scmp.lt.s32.totalorder %s14, 3
      %p102 = pnand %p100, %p101
      %p103 = pneg %p102
      // Predicated region
      $region9: #{tpu_custom_call.1} parent=5 // pred_check
        _
      $region10: #{tpu_custom_call.1} parent=5 // pred_check_branch
        %105 = sbr.rel (%p102) target = $region12
      $region11: #{tpu_custom_call.1} parent=5 // pred_region
        %s106 = ssub.s32 %s14, 1
      $region12: #{tpu_custom_call.1} parent=5 // pred_fallthru
        _
      %p107 = scmp.lt.s32.totalorder %s14, 2
      // Predicated region
      $region13: #{tpu_custom_call.1} parent=5 // pred_check
        %p108 = pneg %p107
      $region14: #{tpu_custom_call.1} parent=5 // pred_check_branch
        %110 = sbr.rel (%p108) target = $region16
      $region15: #{tpu_custom_call.1} parent=5 // pred_region
        // Predicated region
        $region17: #{tpu_custom_call.1} parent=15 // pred_check
          %p111 = pneg %p34
        $region18: #{tpu_custom_call.1} parent=15 // pred_check_branch
          %113 = sbr.rel (%p111) target = $region20
        $region19: #{tpu_custom_call.1} parent=15 // pred_region
          %s114 = sand.u32 %s24, 1
          %s115 = scalar_lea.sflag [#allocation3], %s114
          %s116 = sand.u32 %s24, 1
          %s117 = smul.addr %s116, 256
          %s118 = scalar_lea.vmem [#allocation2], %s117
          %s119 = smul.u32 16, %s14
          %s121 = ssub.s32 4096, 4096
          %122 = vsyncadd %s115, %s121
          %s123 = smul.addr %s119, 2
          %s124 = smul.addr %s123, 128
          %s125 = scalar_lea.hbm %s0, %s124
          %s126 = sshll.u32 %s118, 4
          %s127 = int_to_ptr.vmem [resolvable:$true] %s126
          %132 = dma.hbm_to_vmem [thread:$0]  %s125, 4096, %s127, %s115, 256, 256, 16
        $region20: #{tpu_custom_call.1} parent=15 // pred_fallthru
          _
        // Predicated region
        $region21: #{tpu_custom_call.1} parent=15 // pred_check
          %p133 = pneg %p60
        $region22: #{tpu_custom_call.1} parent=15 // pred_check_branch
          %135 = sbr.rel (%p133) target = $region24
        $region23: #{tpu_custom_call.1} parent=15 // pred_region
          %s136 = sand.u32 %s50, 1
          %s137 = scalar_lea.sflag [#allocation5], %s136
          %s138 = sand.u32 %s50, 1
          %s139 = smul.addr %s138, 256
          %s140 = scalar_lea.vmem [#allocation4], %s139
          %s141 = smul.u32 16, %s14
          %s143 = ssub.s32 4096, 4096
          %144 = vsyncadd %s137, %s143
          %s145 = smul.addr %s141, 2
          %s146 = smul.addr %s145, 128
          %s147 = scalar_lea.hbm %s1, %s146
          %s148 = sshll.u32 %s140, 4
          %s149 = int_to_ptr.vmem [resolvable:$true] %s148
          %154 = dma.hbm_to_vmem [thread:$0]  %s147, 4096, %s149, %s137, 256, 256, 16
        $region24: #{tpu_custom_call.1} parent=15 // pred_fallthru
          _
      $region16: #{tpu_custom_call.1} parent=5 // pred_fallthru
        _
      %p155 = scmp.le.s32.totalorder 1, %s14
      %p156 = scmp.lt.s32.totalorder %s14, 3
      %p157 = pnand %p155, %p156
      %p158 = pneg %p157
      // Predicated region
      $region25: #{tpu_custom_call.1} parent=5 // pred_check
        _
      $region26: #{tpu_custom_call.1} parent=5 // pred_check_branch
        %160 = sbr.rel (%p157) target = $region28
      $region27: #{tpu_custom_call.1} parent=5 // pred_region
        %s161 = ssub.s32 %s14, 1
        %s162 = sand.u32 %s27, 1
        %s163 = scalar_lea.sflag [#allocation3], %s162
        %s164 = sand.u32 %s27, 1
        %s165 = smul.addr %s164, 256
        %s166 = scalar_lea.vmem [#allocation2], %s165
        // Predicated region
        $region29: #{tpu_custom_call.1} parent=27 // pred_check
          %p167 = pneg %p40
        $region30: #{tpu_custom_call.1} parent=27 // pred_check_branch
          %169 = sbr.rel (%p167) target = $region32
        $region31: #{tpu_custom_call.1} parent=27 // pred_region
          %170 = dma.done %s163, 4096
        $region32: #{tpu_custom_call.1} parent=27 // pred_fallthru
          _
        %s171 = sand.u32 %s53, 1
        %s172 = scalar_lea.sflag [#allocation5], %s171
        %s173 = sand.u32 %s53, 1
        %s174 = smul.addr %s173, 256
        %s175 = scalar_lea.vmem [#allocation4], %s174
        // Predicated region
        $region33: #{tpu_custom_call.1} parent=27 // pred_check
          %p176 = pneg %p66
        $region34: #{tpu_custom_call.1} parent=27 // pred_check_branch
          %178 = sbr.rel (%p176) target = $region36
        $region35: #{tpu_custom_call.1} parent=27 // pred_region
          %179 = dma.done %s172, 4096
        $region36: #{tpu_custom_call.1} parent=27 // pred_fallthru
          _
        %s180 = sand.u32 %s27, 1
        %s181 = scalar_lea.sflag [#allocation3], %s180
        %s182 = sand.u32 %s27, 1
        %s183 = smul.addr %s182, 256
        %s184 = scalar_lea.vmem [#allocation2], %s183
        %p185 = pneg %p40
        %p186 = pneg %p37
        %s187 = sand.u32 %s53, 1
        %s188 = scalar_lea.sflag [#allocation5], %s187
        %s189 = sand.u32 %s53, 1
        %s190 = smul.addr %s189, 256
        %s191 = scalar_lea.vmem [#allocation4], %s190
        %p192 = pneg %p66
        %p193 = pneg %p63
        %p194 = pneg %p92
        %p195 = pneg %p89
        %s196 = smul.u32 16, %s19
        %p197 = scmp.lt.s32.totalorder %s196, 31
        %s198 = scalar_select %p197, %s196, 31
        %s199 = smul.addr %s198, 8
        %s200 = scalar_lea.vmem %s2, %s199
        %s201 = smul.u32 16, %s19
        %s202 = smul.u32 16, %s19
        %s203 = smul.u32 16, %s19
        %p204 = scmp.lt.s32.totalorder %s203, 31
        %s205 = scalar_select %p204, %s203, 31
        %s206 = smul.addr %s205, 8
        %s207 = scalar_lea.vmem %s2, %s206
        %s208 = smul.u32 16, %s19
        %v209 = vld [vmem:[%s166] sm:$0xff]
        %v210 = vld [vmem:[%s166 + $0x8] sm:$0xff]
        %v211 = vld [vmem:[%s166 + $0x10] sm:$0xff]
        %v212 = vld [vmem:[%s166 + $0x18] sm:$0xff]
        %v213 = vld [vmem:[%s166 + $0x20] sm:$0xff]
        %v214 = vld [vmem:[%s166 + $0x28] sm:$0xff]
        %v215 = vld [vmem:[%s166 + $0x30] sm:$0xff]
        %v216 = vld [vmem:[%s166 + $0x38] sm:$0xff]
        %v217 = vld [vmem:[%s166 + $0x40] sm:$0xff]
        %v218 = vld [vmem:[%s166 + $0x48] sm:$0xff]
        %v219 = vld [vmem:[%s166 + $0x50] sm:$0xff]
        %v220 = vld [vmem:[%s166 + $0x58] sm:$0xff]
        %v221 = vld [vmem:[%s166 + $0x60] sm:$0xff]
        %v222 = vld [vmem:[%s166 + $0x68] sm:$0xff]
        %v223 = vld [vmem:[%s166 + $0x70] sm:$0xff]
        %v224 = vld [vmem:[%s166 + $0x78] sm:$0xff]
        %v225 = vld [vmem:[%s166 + $0x80] sm:$0xff]
        %v226 = vld [vmem:[%s166 + $0x88] sm:$0xff]
        %v227 = vld [vmem:[%s166 + $0x90] sm:$0xff]
        %v228 = vld [vmem:[%s166 + $0x98] sm:$0xff]
        %v229 = vld [vmem:[%s166 + $0xa0] sm:$0xff]
        %v230 = vld [vmem:[%s166 + $0xa8] sm:$0xff]
        %v231 = vld [vmem:[%s166 + $0xb0] sm:$0xff]
        %v232 = vld [vmem:[%s166 + $0xb8] sm:$0xff]
        %v233 = vld [vmem:[%s166 + $0xc0] sm:$0xff]
        %v234 = vld [vmem:[%s166 + $0xc8] sm:$0xff]
        %v235 = vld [vmem:[%s166 + $0xd0] sm:$0xff]
        %v236 = vld [vmem:[%s166 + $0xd8] sm:$0xff]
        %v237 = vld [vmem:[%s166 + $0xe0] sm:$0xff]
        %v238 = vld [vmem:[%s166 + $0xe8] sm:$0xff]
        %v239 = vld [vmem:[%s166 + $0xf0] sm:$0xff]
        %v240 = vld [vmem:[%s166 + $0xf8] sm:$0xff]
        %v241 = vld [vmem:[%s175] sm:$0xff]
        %v242 = vld [vmem:[%s175 + $0x8] sm:$0xff]
        %v243 = vld [vmem:[%s175 + $0x10] sm:$0xff]
        %v244 = vld [vmem:[%s175 + $0x18] sm:$0xff]
        %v245 = vld [vmem:[%s175 + $0x20] sm:$0xff]
        %v246 = vld [vmem:[%s175 + $0x28] sm:$0xff]
        %v247 = vld [vmem:[%s175 + $0x30] sm:$0xff]
        %v248 = vld [vmem:[%s175 + $0x38] sm:$0xff]
        %v249 = vld [vmem:[%s175 + $0x40] sm:$0xff]
        %v250 = vld [vmem:[%s175 + $0x48] sm:$0xff]
        %v251 = vld [vmem:[%s175 + $0x50] sm:$0xff]
        %v252 = vld [vmem:[%s175 + $0x58] sm:$0xff]
        %v253 = vld [vmem:[%s175 + $0x60] sm:$0xff]
        %v254 = vld [vmem:[%s175 + $0x68] sm:$0xff]
        %v255 = vld [vmem:[%s175 + $0x70] sm:$0xff]
        %v256 = vld [vmem:[%s175 + $0x78] sm:$0xff]
        %v257 = vld [vmem:[%s175 + $0x80] sm:$0xff]
        %v258 = vld [vmem:[%s175 + $0x88] sm:$0xff]
        %v259 = vld [vmem:[%s175 + $0x90] sm:$0xff]
        %v260 = vld [vmem:[%s175 + $0x98] sm:$0xff]
        %v261 = vld [vmem:[%s175 + $0xa0] sm:$0xff]
        %v262 = vld [vmem:[%s175 + $0xa8] sm:$0xff]
        %v263 = vld [vmem:[%s175 + $0xb0] sm:$0xff]
        %v264 = vld [vmem:[%s175 + $0xb8] sm:$0xff]
        %v265 = vld [vmem:[%s175 + $0xc0] sm:$0xff]
        %v266 = vld [vmem:[%s175 + $0xc8] sm:$0xff]
        %v267 = vld [vmem:[%s175 + $0xd0] sm:$0xff]
        %v268 = vld [vmem:[%s175 + $0xd8] sm:$0xff]
        %v269 = vld [vmem:[%s175 + $0xe0] sm:$0xff]
        %v270 = vld [vmem:[%s175 + $0xe8] sm:$0xff]
        %v271 = vld [vmem:[%s175 + $0xf0] sm:$0xff]
        %v272 = vld [vmem:[%s175 + $0xf8] sm:$0xff]
        %v273 = vadd.f32 %v209, %v210
        %274 = vadd.xlane.f32.xlu0 %v273
        %v275 = vpop.xlane.xlu0 %274
        %v276 = vadd.f32 %v211, %v212
        %277 = vadd.xlane.f32.xlu0 %v276
        %v278 = vpop.xlane.xlu0 %277
        %v279 = vadd.f32 %v213, %v214
        %280 = vadd.xlane.f32.xlu0 %v279
        %v281 = vpop.xlane.xlu0 %280
        %v282 = vadd.f32 %v215, %v216
        %283 = vadd.xlane.f32.xlu0 %v282
        %v284 = vpop.xlane.xlu0 %283
        %v285 = vadd.f32 %v217, %v218
        %286 = vadd.xlane.f32.xlu0 %v285
        %v287 = vpop.xlane.xlu0 %286
        %v288 = vadd.f32 %v219, %v220
        %289 = vadd.xlane.f32.xlu0 %v288
        %v290 = vpop.xlane.xlu0 %289
        %v291 = vadd.f32 %v221, %v222
        %292 = vadd.xlane.f32.xlu0 %v291
        %v293 = vpop.xlane.xlu0 %292
        %v294 = vadd.f32 %v223, %v224
        %295 = vadd.xlane.f32.xlu0 %v294
        %v296 = vpop.xlane.xlu0 %295
        %v297 = vadd.f32 %v225, %v226
        %298 = vadd.xlane.f32.xlu0 %v297
        %v299 = vpop.xlane.xlu0 %298
        %v300 = vadd.f32 %v227, %v228
        %301 = vadd.xlane.f32.xlu0 %v300
        %v302 = vpop.xlane.xlu0 %301
        %v303 = vadd.f32 %v229, %v230
        %304 = vadd.xlane.f32.xlu0 %v303
        %v305 = vpop.xlane.xlu0 %304
        %v306 = vadd.f32 %v231, %v232
        %307 = vadd.xlane.f32.xlu0 %v306
        %v308 = vpop.xlane.xlu0 %307
        %v309 = vadd.f32 %v233, %v234
        %310 = vadd.xlane.f32.xlu0 %v309
        %v311 = vpop.xlane.xlu0 %310
        %v312 = vadd.f32 %v235, %v236
        %313 = vadd.xlane.f32.xlu0 %v312
        %v314 = vpop.xlane.xlu0 %313
        %v315 = vadd.f32 %v237, %v238
        %316 = vadd.xlane.f32.xlu0 %v315
        %v317 = vpop.xlane.xlu0 %316
        %v318 = vadd.f32 %v239, %v240
        %319 = vadd.xlane.f32.xlu0 %v318
        %v320 = vpop.xlane.xlu0 %319
        %v321 = vadd.f32 %v241, %v242
        %322 = vadd.xlane.f32.xlu0 %v321
        %v323 = vpop.xlane.xlu0 %322
        %v324 = vadd.f32 %v243, %v244
        %325 = vadd.xlane.f32.xlu0 %v324
        %v326 = vpop.xlane.xlu0 %325
        %v327 = vadd.f32 %v245, %v246
        %328 = vadd.xlane.f32.xlu0 %v327
        %v329 = vpop.xlane.xlu0 %328
        %v330 = vadd.f32 %v247, %v248
        %331 = vadd.xlane.f32.xlu0 %v330
        %v332 = vpop.xlane.xlu0 %331
        %v333 = vadd.f32 %v249, %v250
        %334 = vadd.xlane.f32.xlu0 %v333
        %v335 = vpop.xlane.xlu0 %334
        %v336 = vadd.f32 %v251, %v252
        %337 = vadd.xlane.f32.xlu0 %v336
        %v338 = vpop.xlane.xlu0 %337
        %v339 = vadd.f32 %v253, %v254
        %340 = vadd.xlane.f32.xlu0 %v339
        %v341 = vpop.xlane.xlu0 %340
        %v342 = vadd.f32 %v255, %v256
        %343 = vadd.xlane.f32.xlu0 %v342
        %v344 = vpop.xlane.xlu0 %343
        %v345 = vadd.f32 %v257, %v258
        %346 = vadd.xlane.f32.xlu0 %v345
        %v347 = vpop.xlane.xlu0 %346
        %v348 = vadd.f32 %v259, %v260
        %349 = vadd.xlane.f32.xlu0 %v348
        %v350 = vpop.xlane.xlu0 %349
        %v351 = vadd.f32 %v261, %v262
        %352 = vadd.xlane.f32.xlu0 %v351
        %v353 = vpop.xlane.xlu0 %352
        %v354 = vadd.f32 %v263, %v264
        %355 = vadd.xlane.f32.xlu0 %v354
        %v356 = vpop.xlane.xlu0 %355
        %v357 = vadd.f32 %v265, %v266
        %358 = vadd.xlane.f32.xlu0 %v357
        %v359 = vpop.xlane.xlu0 %358
        %v360 = vadd.f32 %v267, %v268
        %361 = vadd.xlane.f32.xlu0 %v360
        %v362 = vpop.xlane.xlu0 %361
        %v363 = vadd.f32 %v269, %v270
        %364 = vadd.xlane.f32.xlu0 %v363
        %v365 = vpop.xlane.xlu0 %364
        %v366 = vadd.f32 %v271, %v272
        %367 = vadd.xlane.f32.xlu0 %v366
        %v368 = vpop.xlane.xlu0 %367
        %v369 = vmul.f32 %v209, %v241
        %v370 = vmul.f32 %v210, %v242
        %v371 = vmul.f32 %v211, %v243
        %v372 = vmul.f32 %v212, %v244
        %v373 = vmul.f32 %v213, %v245
        %v374 = vmul.f32 %v214, %v246
        %v375 = vmul.f32 %v215, %v247
        %v376 = vmul.f32 %v216, %v248
        %v377 = vmul.f32 %v217, %v249
        %v378 = vmul.f32 %v218, %v250
        %v379 = vmul.f32 %v219, %v251
        %v380 = vmul.f32 %v220, %v252
        %v381 = vmul.f32 %v221, %v253
        %v382 = vmul.f32 %v222, %v254
        %v383 = vmul.f32 %v223, %v255
        %v384 = vmul.f32 %v224, %v256
        %v385 = vmul.f32 %v225, %v257
        %v386 = vmul.f32 %v226, %v258
        %v387 = vmul.f32 %v227, %v259
        %v388 = vmul.f32 %v228, %v260
        %v389 = vmul.f32 %v229, %v261
        %v390 = vmul.f32 %v230, %v262
        %v391 = vmul.f32 %v231, %v263
        %v392 = vmul.f32 %v232, %v264
        %v393 = vmul.f32 %v233, %v265
        %v394 = vmul.f32 %v234, %v266
        %v395 = vmul.f32 %v235, %v267
        %v396 = vmul.f32 %v236, %v268
        %v397 = vmul.f32 %v237, %v269
        %v398 = vmul.f32 %v238, %v270
        %v399 = vmul.f32 %v239, %v271
        %v400 = vmul.f32 %v240, %v272
        %v401 = vadd.f32 %v369, %v370
        %402 = vadd.xlane.f32.xlu0 %v401
        %v403 = vpop.xlane.xlu0 %402
        %v404 = vadd.f32 %v371, %v372
        %405 = vadd.xlane.f32.xlu0 %v404
        %v406 = vpop.xlane.xlu0 %405
        %v407 = vadd.f32 %v373, %v374
        %408 = vadd.xlane.f32.xlu0 %v407
        %v409 = vpop.xlane.xlu0 %408
        %v410 = vadd.f32 %v375, %v376
        %411 = vadd.xlane.f32.xlu0 %v410
        %v412 = vpop.xlane.xlu0 %411
        %v413 = vadd.f32 %v377, %v378
        %414 = vadd.xlane.f32.xlu0 %v413
        %v415 = vpop.xlane.xlu0 %414
        %v416 = vadd.f32 %v379, %v380
        %417 = vadd.xlane.f32.xlu0 %v416
        %v418 = vpop.xlane.xlu0 %417
        %v419 = vadd.f32 %v381, %v382
        %420 = vadd.xlane.f32.xlu0 %v419
        %v421 = vpop.xlane.xlu0 %420
        %v422 = vadd.f32 %v383, %v384
        %423 = vadd.xlane.f32.xlu0 %v422
        %v424 = vpop.xlane.xlu0 %423
        %v425 = vadd.f32 %v385, %v386
        %426 = vadd.xlane.f32.xlu0 %v425
        %v427 = vpop.xlane.xlu0 %426
        %v428 = vadd.f32 %v387, %v388
        %429 = vadd.xlane.f32.xlu0 %v428
        %v430 = vpop.xlane.xlu0 %429
        %v431 = vadd.f32 %v389, %v390
        %432 = vadd.xlane.f32.xlu0 %v431
        %v433 = vpop.xlane.xlu0 %432
        %v434 = vadd.f32 %v391, %v392
        %435 = vadd.xlane.f32.xlu0 %v434
        %v436 = vpop.xlane.xlu0 %435
        %v437 = vadd.f32 %v393, %v394
        %438 = vadd.xlane.f32.xlu0 %v437
        %v439 = vpop.xlane.xlu0 %438
        %v440 = vadd.f32 %v395, %v396
        %441 = vadd.xlane.f32.xlu0 %v440
        %v442 = vpop.xlane.xlu0 %441
        %v443 = vadd.f32 %v397, %v398
        %444 = vadd.xlane.f32.xlu0 %v443
        %v445 = vpop.xlane.xlu0 %444
        %v446 = vadd.f32 %v399, %v400
        %447 = vadd.xlane.f32.xlu0 %v446
        %v448 = vpop.xlane.xlu0 %447
        %v449 = vmul.f32 %v275, 0.00390625
        %v450 = vmul.f32 %v278, 0.00390625
        %v451 = vmul.f32 %v281, 0.00390625
        %v452 = vmul.f32 %v284, 0.00390625
        %v453 = vmul.f32 %v287, 0.00390625
        %v454 = vmul.f32 %v290, 0.00390625
        %v455 = vmul.f32 %v293, 0.00390625
        %v456 = vmul.f32 %v296, 0.00390625
        %v457 = vmul.f32 %v299, 0.00390625
        %v458 = vmul.f32 %v302, 0.00390625
        %v459 = vmul.f32 %v305, 0.00390625
        %v460 = vmul.f32 %v308, 0.00390625
        %v461 = vmul.f32 %v311, 0.00390625
        %v462 = vmul.f32 %v314, 0.00390625
        %v463 = vmul.f32 %v317, 0.00390625
        %v464 = vmul.f32 %v320, 0.00390625
        %v465 = vmul.f32 %v449, %v323
        %v466 = vmul.f32 %v450, %v326
        %v467 = vmul.f32 %v451, %v329
        %v468 = vmul.f32 %v452, %v332
        %v469 = vmul.f32 %v453, %v335
        %v470 = vmul.f32 %v454, %v338
        %v471 = vmul.f32 %v455, %v341
        %v472 = vmul.f32 %v456, %v344
        %v473 = vmul.f32 %v457, %v347
        %v474 = vmul.f32 %v458, %v350
        %v475 = vmul.f32 %v459, %v353
        %v476 = vmul.f32 %v460, %v356
        %v477 = vmul.f32 %v461, %v359
        %v478 = vmul.f32 %v462, %v362
        %v479 = vmul.f32 %v463, %v365
        %v480 = vmul.f32 %v464, %v368
        %v481 = vsub.f32 %v403, %v465
        %v482 = vsub.f32 %v406, %v466
        %v483 = vsub.f32 %v409, %v467
        %v484 = vsub.f32 %v412, %v468
        %v485 = vsub.f32 %v415, %v469
        %v486 = vsub.f32 %v418, %v470
        %v487 = vsub.f32 %v421, %v471
        %v488 = vsub.f32 %v424, %v472
        %v489 = vsub.f32 %v427, %v473
        %v490 = vsub.f32 %v430, %v474
        %v491 = vsub.f32 %v433, %v475
        %v492 = vsub.f32 %v436, %v476
        %v493 = vsub.f32 %v439, %v477
        %v494 = vsub.f32 %v442, %v478
        %v495 = vsub.f32 %v445, %v479
        %v496 = vsub.f32 %v448, %v480
        %v497 = vsub.f32 %v209, %v449
        %v498 = vsub.f32 %v210, %v449
        %v499 = vsub.f32 %v211, %v450
        %v500 = vsub.f32 %v212, %v450
        %v501 = vsub.f32 %v213, %v451
        %v502 = vsub.f32 %v214, %v451
        %v503 = vsub.f32 %v215, %v452
        %v504 = vsub.f32 %v216, %v452
        %v505 = vsub.f32 %v217, %v453
        %v506 = vsub.f32 %v218, %v453
        %v507 = vsub.f32 %v219, %v454
        %v508 = vsub.f32 %v220, %v454
        %v509 = vsub.f32 %v221, %v455
        %v510 = vsub.f32 %v222, %v455
        %v511 = vsub.f32 %v223, %v456
        %v512 = vsub.f32 %v224, %v456
        %v513 = vsub.f32 %v225, %v457
        %v514 = vsub.f32 %v226, %v457
        %v515 = vsub.f32 %v227, %v458
        %v516 = vsub.f32 %v228, %v458
        %v517 = vsub.f32 %v229, %v459
        %v518 = vsub.f32 %v230, %v459
        %v519 = vsub.f32 %v231, %v460
        %v520 = vsub.f32 %v232, %v460
        %v521 = vsub.f32 %v233, %v461
        %v522 = vsub.f32 %v234, %v461
        %v523 = vsub.f32 %v235, %v462
        %v524 = vsub.f32 %v236, %v462
        %v525 = vsub.f32 %v237, %v463
        %v526 = vsub.f32 %v238, %v463
        %v527 = vsub.f32 %v239, %v464
        %v528 = vsub.f32 %v240, %v464
        %v529 = vand.u32 2147483647, %v497
        %v530 = vand.u32 2147483647, %v498
        %v531 = vand.u32 2147483647, %v499
        %v532 = vand.u32 2147483647, %v500
        %v533 = vand.u32 2147483647, %v501
        %v534 = vand.u32 2147483647, %v502
        %v535 = vand.u32 2147483647, %v503
        %v536 = vand.u32 2147483647, %v504
        %v537 = vand.u32 2147483647, %v505
        %v538 = vand.u32 2147483647, %v506
        %v539 = vand.u32 2147483647, %v507
        %v540 = vand.u32 2147483647, %v508
        %v541 = vand.u32 2147483647, %v509
        %v542 = vand.u32 2147483647, %v510
        %v543 = vand.u32 2147483647, %v511
        %v544 = vand.u32 2147483647, %v512
        %v545 = vand.u32 2147483647, %v513
        %v546 = vand.u32 2147483647, %v514
        %v547 = vand.u32 2147483647, %v515
        %v548 = vand.u32 2147483647, %v516
        %v549 = vand.u32 2147483647, %v517
        %v550 = vand.u32 2147483647, %v518
        %v551 = vand.u32 2147483647, %v519
        %v552 = vand.u32 2147483647, %v520
        %v553 = vand.u32 2147483647, %v521
        %v554 = vand.u32 2147483647, %v522
        %v555 = vand.u32 2147483647, %v523
        %v556 = vand.u32 2147483647, %v524
        %v557 = vand.u32 2147483647, %v525
        %v558 = vand.u32 2147483647, %v526
        %v559 = vand.u32 2147483647, %v527
        %v560 = vand.u32 2147483647, %v528
        %v561 = vadd.f32 %v529, %v530
        %562 = vadd.xlane.f32.xlu0 %v561
        %v563 = vpop.xlane.xlu0 %562
        %v564 = vadd.f32 %v531, %v532
        %565 = vadd.xlane.f32.xlu0 %v564
        %v566 = vpop.xlane.xlu0 %565
        %v567 = vadd.f32 %v533, %v534
        %568 = vadd.xlane.f32.xlu0 %v567
        %v569 = vpop.xlane.xlu0 %568
        %v570 = vadd.f32 %v535, %v536
        %571 = vadd.xlane.f32.xlu0 %v570
        %v572 = vpop.xlane.xlu0 %571
        %v573 = vadd.f32 %v537, %v538
        %574 = vadd.xlane.f32.xlu0 %v573
        %v575 = vpop.xlane.xlu0 %574
        %v576 = vadd.f32 %v539, %v540
        %577 = vadd.xlane.f32.xlu0 %v576
        %v578 = vpop.xlane.xlu0 %577
        %v579 = vadd.f32 %v541, %v542
        %580 = vadd.xlane.f32.xlu0 %v579
        %v581 = vpop.xlane.xlu0 %580
        %v582 = vadd.f32 %v543, %v544
        %583 = vadd.xlane.f32.xlu0 %v582
        %v584 = vpop.xlane.xlu0 %583
        %v585 = vadd.f32 %v545, %v546
        %586 = vadd.xlane.f32.xlu0 %v585
        %v587 = vpop.xlane.xlu0 %586
        %v588 = vadd.f32 %v547, %v548
        %589 = vadd.xlane.f32.xlu0 %v588
        %v590 = vpop.xlane.xlu0 %589
        %v591 = vadd.f32 %v549, %v550
        %592 = vadd.xlane.f32.xlu0 %v591
        %v593 = vpop.xlane.xlu0 %592
        %v594 = vadd.f32 %v551, %v552
        %595 = vadd.xlane.f32.xlu0 %v594
        %v596 = vpop.xlane.xlu0 %595
        %v597 = vadd.f32 %v553, %v554
        %598 = vadd.xlane.f32.xlu0 %v597
        %v599 = vpop.xlane.xlu0 %598
        %v600 = vadd.f32 %v555, %v556
        %601 = vadd.xlane.f32.xlu0 %v600
        %v602 = vpop.xlane.xlu0 %601
        %v603 = vadd.f32 %v557, %v558
        %604 = vadd.xlane.f32.xlu0 %v603
        %v605 = vpop.xlane.xlu0 %604
        %v606 = vadd.f32 %v559, %v560
        %607 = vadd.xlane.f32.xlu0 %v606
        %v608 = vpop.xlane.xlu0 %607
        %v609 = vrcp.pop %v563
        %v610 = vmul.f32 %v481, %v609
        %v611 = vrcp.pop %v566
        %v612 = vmul.f32 %v482, %v611
        %v613 = vrcp.pop %v569
        %v614 = vmul.f32 %v483, %v613
        %v615 = vrcp.pop %v572
        %v616 = vmul.f32 %v484, %v615
        %v617 = vrcp.pop %v575
        %v618 = vmul.f32 %v485, %v617
        %v619 = vrcp.pop %v578
        %v620 = vmul.f32 %v486, %v619
        %v621 = vrcp.pop %v581
        %v622 = vmul.f32 %v487, %v621
        %v623 = vrcp.pop %v584
        %v624 = vmul.f32 %v488, %v623
        %v625 = vrcp.pop %v587
        %v626 = vmul.f32 %v489, %v625
        %v627 = vrcp.pop %v590
        %v628 = vmul.f32 %v490, %v627
        %v629 = vrcp.pop %v593
        %v630 = vmul.f32 %v491, %v629
        %v631 = vrcp.pop %v596
        %v632 = vmul.f32 %v492, %v631
        %v633 = vrcp.pop %v599
        %v634 = vmul.f32 %v493, %v633
        %v635 = vrcp.pop %v602
        %v636 = vmul.f32 %v494, %v635
        %v637 = vrcp.pop %v605
        %v638 = vmul.f32 %v495, %v637
        %v639 = vrcp.pop %v608
        %v640 = vmul.f32 %v496, %v639
        %vm641 = vcmask 7168
        %642 = vst.msk [vmem:[%s207] sm:$0xff] %vm641, %v610
        %643 = vst.msk [vmem:[%s207 + $0x8] sm:$0xff] %vm641, %v612
        %644 = vst.msk [vmem:[%s207 + $0x10] sm:$0xff] %vm641, %v614
        %645 = vst.msk [vmem:[%s207 + $0x18] sm:$0xff] %vm641, %v616
        %646 = vst.msk [vmem:[%s207 + $0x20] sm:$0xff] %vm641, %v618
        %647 = vst.msk [vmem:[%s207 + $0x28] sm:$0xff] %vm641, %v620
        %648 = vst.msk [vmem:[%s207 + $0x30] sm:$0xff] %vm641, %v622
        %649 = vst.msk [vmem:[%s207 + $0x38] sm:$0xff] %vm641, %v624
        %650 = vst.msk [vmem:[%s207 + $0x40] sm:$0xff] %vm641, %v626
        %651 = vst.msk [vmem:[%s207 + $0x48] sm:$0xff] %vm641, %v628
        %652 = vst.msk [vmem:[%s207 + $0x50] sm:$0xff] %vm641, %v630
        %653 = vst.msk [vmem:[%s207 + $0x58] sm:$0xff] %vm641, %v632
        %654 = vst.msk [vmem:[%s207 + $0x60] sm:$0xff] %vm641, %v634
        %655 = vst.msk [vmem:[%s207 + $0x68] sm:$0xff] %vm641, %v636
        %656 = vst.msk [vmem:[%s207 + $0x70] sm:$0xff] %vm641, %v638
        %657 = vst.msk [vmem:[%s207 + $0x78] sm:$0xff] %vm641, %v640
        %s658 = smul.u32 16, %s19
        %p659 = scmp.lt.s32.totalorder %s658, 31
        %s660 = scalar_select %p659, %s658, 31
        %s661 = smul.addr %s660, 8
        %s662 = scalar_lea.vmem %s2, %s661
        // Predicated region
        $region37: #{tpu_custom_call.1} parent=27 // pred_check
          %p663 = pneg %p89
        $region38: #{tpu_custom_call.1} parent=27 // pred_check_branch
          %665 = sbr.rel (%p663) target = $region40
        $region39: #{tpu_custom_call.1} parent=27 // pred_region
          %s666 = smul.u32 16, %s19
        $region40: #{tpu_custom_call.1} parent=27 // pred_fallthru
          _
      $region28: #{tpu_custom_call.1} parent=5 // pred_fallthru
        _
      %p667 = scmp.le.s32.totalorder 2, %s14
      // Predicated region
      $region41: #{tpu_custom_call.1} parent=5 // pred_check
        %p668 = pneg %p667
      $region42: #{tpu_custom_call.1} parent=5 // pred_check_branch
        %670 = sbr.rel (%p668) target = $region44
      $region43: #{tpu_custom_call.1} parent=5 // pred_region
        %s671 = ssub.s32 %s14, 2
        // Predicated region
        $region45: #{tpu_custom_call.1} parent=43 // pred_check
          %p672 = pneg %p95
        $region46: #{tpu_custom_call.1} parent=43 // pred_check_branch
          %674 = sbr.rel (%p672) target = $region48
        $region47: #{tpu_custom_call.1} parent=43 // pred_region
          %s675 = smul.u32 16, %s20
          %p676 = scmp.lt.s32.totalorder %s675, 31
          %s677 = scalar_select %p676, %s675, 31
          %s678 = smul.addr %s677, 8
          %s679 = scalar_lea.vmem %s2, %s678
        $region48: #{tpu_custom_call.1} parent=43 // pred_fallthru
          _
      $region44: #{tpu_custom_call.1} parent=5 // pred_fallthru
        _
    $region6: #{tpu_custom_call.1} parent=1 // loop_footer
      %s18 = sadd.s32 1, %s14
    $region7: #{tpu_custom_call.1} parent=1 // loop_footer_branch
      %13 = sbr.rel target = $region3
    $region8: #{tpu_custom_call.1} parent=1 // loop_exit
      _
    %680 = vsyncpa [#allocation3], 1
    %s681 = scalar_lea.sflag [#allocation3], 1
    %682 = vsyncpa %s681, 1
    %683 = vsyncpa [#allocation5], 1
    %s684 = scalar_lea.sflag [#allocation5], 1
    %685 = vsyncpa %s684, 1

</llo_original>
